<compile_context>
chip_gen: v7x
topology: tpu7x:2x2x1
jax: 0.10.0
libtpu: 0.0.40
codegen_flags: <defaults>
</compile_context>

<pallas_src>
from functools import partial

import jax
import jax.numpy as jnp
from jax.experimental import pallas as pl
from jax.experimental.pallas import tpu as pltpu


def _ffm_kernel(x1_ref, x2_ref, w1_ref, b1_ref, w2_ref, b2_ref, o_ref,
                *, n_total, tile_n, ragged):
    # x1_ref/x2_ref: (1, Cin, TN)   w1_ref: (Cout, Cin)   b1_ref: (Cout, 1)
    # w2_ref: (Cout, Cout)          b2_ref: (Cout, 1)     o_ref : (1, Cout, TN)
    x = x1_ref[0] + x2_ref[0]                                        # (Cin, TN)
    h = jnp.dot(w1_ref[...], x, preferred_element_type=jnp.float32)  # MXU
    h = jnp.maximum(h + b1_ref[...], 0.0)                            # folded BN1 + ReLU
    y = jnp.dot(w2_ref[...], h, preferred_element_type=jnp.float32)  # MXU
    y = jnp.maximum(y + b2_ref[...], 0.0)                            # folded BN2 + ReLU
    if ragged:
        # Mask out-of-range lanes on the boundary tile so unspecified padded
        # input columns can never be written out as garbage.
        j = pl.program_id(1)
        col = jax.lax.broadcasted_iota(jnp.int32, y.shape, 1)
        y = jnp.where(col < (n_total - j * tile_n), y, 0.0)
    o_ref[0] = y.astype(o_ref.dtype)


def _fold_bn(w, b, gamma, beta, mean, var, eps):
    """Fold eval-mode BatchNorm1d into a 1x1-conv (linear) layer."""
    scale = gamma / jnp.sqrt(var + eps)              # (Cout,)
    w_eff = w * scale[:, None]                       # (Cout, Cin)
    b_eff = scale * (b - mean) + beta                # (Cout,)
    return w_eff.astype(jnp.float32), b_eff.reshape(-1, 1).astype(jnp.float32)


def _pick_tile_n(n, cap=8192, min_steps=2):
    """Lane-dense tile (multiple of 128) giving >= min_steps tiles along N."""
    if n <= 128:
        return n, 1                         # single full-width tile (block == full dim)
    n_tiles_wanted = max(min_steps, pl.cdiv(n, cap))
    tile = pl.cdiv(pl.cdiv(n, n_tiles_wanted), 128) * 128
    tile = max(128, min(cap, tile))
    return tile, pl.cdiv(n, tile)


def feature_fusion_forward(feat1, feat2, params, *, eps=1e-5, max_tile_n=8192):
    """feat1, feat2: (B, Cin, N) float32. Returns (B, Cout, N) float32."""
    B, Cin, N = feat1.shape
    Cout = params["w1"].shape[0]

    # Fold BN into the two 1x1 convolutions (inference semantics).
    w1, b1 = _fold_bn(params["w1"], params["b1"], params["bn1_gamma"],
                      params["bn1_beta"], params["bn1_mean"], params["bn1_var"], eps)
    w2, b2 = _fold_bn(params["w2"], params["b2"], params["bn2_gamma"],
                      params["bn2_beta"], params["bn2_mean"], params["bn2_var"], eps)

    tile_n, n_tiles = _pick_tile_n(N, max_tile_n)
    ragged = (N % tile_n) != 0
    grid = (B, n_tiles)                     # both axes parallel -> TC sharding on v7x

    # Honest cost estimate for XLA scheduling (no padding traffic any more).
    flops = 2 * B * N * (Cout * Cin + Cout * Cout)
    bytes_accessed = 4 * (2 * B * Cin * N + B * Cout * N
                          + Cout * Cin + Cout * Cout + 2 * Cout)

    # Raise the scoped VMEM limit enough for the double-buffered large tiles;
    # 48 MiB stays below v7x's 64 MiB physical VMEM (v5e/v6e have 128 MiB).
    tile_bytes = 4 * tile_n * (2 * Cin + Cout)
    vmem_limit = int(min(48 * 1024 * 1024,
                         max(3 * tile_bytes + (4 << 20), 32 * 1024 * 1024)))

    kernel = partial(_ffm_kernel, n_total=N, tile_n=tile_n, ragged=ragged)

    out = pl.pallas_call(
        kernel,
        out_shape=jax.ShapeDtypeStruct((B, Cout, N), feat1.dtype),
        grid_spec=pl.GridSpec(
            grid=grid,
            in_specs=[
                pl.BlockSpec((1, Cin, tile_n), lambda b, j: (b, 0, j)),   # feat1 tile
                pl.BlockSpec((1, Cin, tile_n), lambda b, j: (b, 0, j)),   # feat2 tile
                pl.BlockSpec((Cout, Cin), lambda b, j: (0, 0)),           # W1 (whole)
                pl.BlockSpec((Cout, 1), lambda b, j: (0, 0)),             # b1 (whole)
                pl.BlockSpec((Cout, Cout), lambda b, j: (0, 0)),          # W2 (whole)
                pl.BlockSpec((Cout, 1), lambda b, j: (0, 0)),             # b2 (whole)
            ],
            out_specs=pl.BlockSpec((1, Cout, tile_n), lambda b, j: (b, 0, j)),
        ),
        compiler_params=pltpu.CompilerParams(
            dimension_semantics=("parallel", "parallel"),
            vmem_limit_bytes=vmem_limit,
        ),
        cost_estimate=pl.CostEstimate(
            flops=flops, transcendentals=0, bytes_accessed=bytes_accessed),
    )(feat1, feat2, w1, b1, w2, b2)

    return out


def _reference(feat1, feat2, p, eps=1e-5):
    x = feat1 + feat2
    h = jnp.einsum("oc,bcn->bon", p["w1"], x) + p["b1"][None, :, None]
    h = ((h - p["bn1_mean"][None, :, None])
         / jnp.sqrt(p["bn1_var"][None, :, None] + eps)
         * p["bn1_gamma"][None, :, None] + p["bn1_beta"][None, :, None])
    h = jnp.maximum(h, 0.0)
    y = jnp.einsum("oc,bcn->bon", p["w2"], h) + p["b2"][None, :, None]
    y = ((y - p["bn2_mean"][None, :, None])
         / jnp.sqrt(p["bn2_var"][None, :, None] + eps)
         * p["bn2_gamma"][None, :, None] + p["bn2_beta"][None, :, None])
    return jnp.maximum(y, 0.0)


def _make_params(key, Cin, Cout):
    ks = jax.random.split(key, 12)
    return {
        # Conv1d(in, out, 1): weight (out, in), bias (out,)
        "w1": jax.random.normal(ks[0], (Cout, Cin), jnp.float32) / jnp.sqrt(Cin),
        "b1": jax.random.normal(ks[1], (Cout,), jnp.float32) * 0.1,
        "w2": jax.random.normal(ks[2], (Cout, Cout), jnp.float32) / jnp.sqrt(Cout),
        "b2": jax.random.normal(ks[3], (Cout,), jnp.float32) * 0.1,
        # BatchNorm1d (eval mode) parameters / running stats.
        "bn1_gamma": 1.0 + 0.1 * jax.random.normal(ks[4], (Cout,), jnp.float32),
        "bn1_beta": 0.1 * jax.random.normal(ks[5], (Cout,), jnp.float32),
        "bn1_mean": 0.1 * jax.random.normal(ks[6], (Cout,), jnp.float32),
        "bn1_var": jnp.abs(1.0 + 0.1 * jax.random.normal(ks[7], (Cout,), jnp.float32)),
        "bn2_gamma": 1.0 + 0.1 * jax.random.normal(ks[8], (Cout,), jnp.float32),
        "bn2_beta": 0.1 * jax.random.normal(ks[9], (Cout,), jnp.float32),
        "bn2_mean": 0.1 * jax.random.normal(ks[10], (Cout,), jnp.float32),
        "bn2_var": jnp.abs(1.0 + 0.1 * jax.random.normal(ks[11], (Cout,), jnp.float32)),
    }


if __name__ == "__main__":
    # Small shapes consistent with the module: batch=2, in_channels=64,
    # out_channels=32, num_points=512.
    key = jax.random.PRNGKey(0)
    kp, k1, k2, k3, k4 = jax.random.split(key, 5)

    B, Cin, Cout, N = 2, 64, 32, 512
    params = _make_params(kp, Cin, Cout)

    feat1 = jax.random.normal(k1, (B, Cin, N), dtype=jnp.float32)
    feat2 = jax.random.normal(k2, (B, Cin, N), dtype=jnp.float32)

    out = feature_fusion_forward(feat1, feat2, params)
    out = jax.block_until_ready(out)
    ref = _reference(feat1, feat2, params)
    assert out.shape == (B, Cout, N)
    assert jnp.allclose(out, ref, atol=1e-4, rtol=1e-4), (
        float(jnp.max(jnp.abs(out - ref))))

    # Second case with N not a multiple of the tile width: exercises the
    # ragged boundary tile and the masked store (no wrapper pad/slice).
    N2 = 400
    feat1b = jax.random.normal(k3, (B, Cin, N2), dtype=jnp.float32)
    feat2b = jax.random.normal(k4, (B, Cin, N2), dtype=jnp.float32)
    out2 = jax.block_until_ready(feature_fusion_forward(feat1b, feat2b, params))
    ref2 = _reference(feat1b, feat2b, params)
    assert out2.shape == (B, Cout, N2)
    assert jnp.allclose(out2, ref2, atol=1e-4, rtol=1e-4), (
        float(jnp.max(jnp.abs(out2 - ref2))))

    print("KERNEL_OK")
</pallas_src>

<mosaic_0001>
module attributes {stable_mosaic.version = 11 : i64} {
  func.func @_ffm_kernel(%arg0: i32, %arg1: i32, %arg2: memref<1x64x256xf32, #tpu.memory_space<vmem>>, %arg3: memref<1x64x256xf32, #tpu.memory_space<vmem>>, %arg4: memref<32x64xf32, #tpu.memory_space<vmem>>, %arg5: memref<32x1xf32, #tpu.memory_space<vmem>>, %arg6: memref<32x32xf32, #tpu.memory_space<vmem>>, %arg7: memref<32x1xf32, #tpu.memory_space<vmem>>, %arg8: memref<1x32x256xf32, #tpu.memory_space<vmem>>) attributes {dimension_semantics = [#tpu.dimension_semantics<parallel>, #tpu.dimension_semantics<parallel>], iteration_bounds = array<i64: 2, 2>, scalar_prefetch = 0 : i64, scratch_operands = 0 : i64, tpu.core_type = #tpu.core_type<tc>, window_params = [{transform_indices = @transform_0, window_bounds = array<i64: 1, 64, 256>}, {transform_indices = @transform_1, window_bounds = array<i64: 1, 64, 256>}, {pipeline_mode = #tpu.pipeline_mode<synchronous>, transform_indices = @transform_2, window_bounds = array<i64: 32, 64>}, {pipeline_mode = #tpu.pipeline_mode<synchronous>, transform_indices = @transform_3, window_bounds = array<i64: 32, 1>}, {pipeline_mode = #tpu.pipeline_mode<synchronous>, transform_indices = @transform_4, window_bounds = array<i64: 32, 32>}, {pipeline_mode = #tpu.pipeline_mode<synchronous>, transform_indices = @transform_5, window_bounds = array<i64: 32, 1>}, {transform_indices = @transform_6, window_bounds = array<i64: 1, 32, 256>}]} {
    %c0 = arith.constant 0 : index
    %c0_0 = arith.constant 0 : index
    %c0_1 = arith.constant 0 : index
    %0 = vector.load %arg2[%c0, %c0_0, %c0_1] : memref<1x64x256xf32, #tpu.memory_space<vmem>>, vector<1x64x256xf32>
    %1 = vector.shape_cast %0 : vector<1x64x256xf32> to vector<64x256xf32>
    %c0_2 = arith.constant 0 : index
    %c0_3 = arith.constant 0 : index
    %c0_4 = arith.constant 0 : index
    %2 = vector.load %arg3[%c0_2, %c0_3, %c0_4] : memref<1x64x256xf32, #tpu.memory_space<vmem>>, vector<1x64x256xf32>
    %3 = vector.shape_cast %2 : vector<1x64x256xf32> to vector<64x256xf32>
    %4 = arith.addf %1, %3 : vector<64x256xf32>
    %c0_5 = arith.constant 0 : index
    %c0_6 = arith.constant 0 : index
    %5 = vector.load %arg4[%c0_5, %c0_6] : memref<32x64xf32, #tpu.memory_space<vmem>>, vector<32x64xf32>
    %cst = arith.constant dense<0.000000e+00> : vector<32x256xf32>
    %6 = tpu.matmul %5, %4, %cst {dimension_numbers = #tpu.dot_dimension_numbers<[1], [0], [0], [1], [0, 0, 1, 1], [], []>} : vector<32x64xf32>, vector<64x256xf32>, vector<32x256xf32> -> vector<32x256xf32>
    %c0_7 = arith.constant 0 : index
    %c0_8 = arith.constant 0 : index
    %7 = vector.load %arg5[%c0_7, %c0_8] : memref<32x1xf32, #tpu.memory_space<vmem>>, vector<32x1xf32>
    %8 = vector.broadcast %7 : vector<32x1xf32> to vector<32x256xf32>
    %9 = arith.addf %6, %8 : vector<32x256xf32>
    %cst_9 = arith.constant 0.000000e+00 : f32
    %10 = vector.broadcast %cst_9 : f32 to vector<32x256xf32>
    %11 = arith.maximumf %9, %10 : vector<32x256xf32>
    %c0_10 = arith.constant 0 : index
    %c0_11 = arith.constant 0 : index
    %12 = vector.load %arg6[%c0_10, %c0_11] : memref<32x32xf32, #tpu.memory_space<vmem>>, vector<32x32xf32>
    %cst_12 = arith.constant dense<0.000000e+00> : vector<32x256xf32>
    %13 = tpu.matmul %12, %11, %cst_12 {dimension_numbers = #tpu.dot_dimension_numbers<[1], [0], [0], [1], [0, 0, 1, 1], [], []>} : vector<32x32xf32>, vector<32x256xf32>, vector<32x256xf32> -> vector<32x256xf32>
    %c0_13 = arith.constant 0 : index
    %c0_14 = arith.constant 0 : index
    %14 = vector.load %arg7[%c0_13, %c0_14] : memref<32x1xf32, #tpu.memory_space<vmem>>, vector<32x1xf32>
    %15 = vector.broadcast %14 : vector<32x1xf32> to vector<32x256xf32>
    %16 = arith.addf %13, %15 : vector<32x256xf32>
    %cst_15 = arith.constant 0.000000e+00 : f32
    %17 = vector.broadcast %cst_15 : f32 to vector<32x256xf32>
    %18 = arith.maximumf %16, %17 : vector<32x256xf32>
    %c0_16 = arith.constant 0 : index
    %c0_17 = arith.constant 0 : index
    %c0_18 = arith.constant 0 : index
    %19 = vector.load %arg8[%c0_16, %c0_17, %c0_18] : memref<1x32x256xf32, #tpu.memory_space<vmem>>, vector<1x32x256xf32>
    %20 = vector.shape_cast %19 : vector<1x32x256xf32> to vector<32x256xf32>
    %21 = vector.shape_cast %18 : vector<32x256xf32> to vector<1x32x256xf32>
    tpu.vector_store %arg8[%c0_16, %c0_17, %c0_18], %21 {strides = array<i32>} : memref<1x32x256xf32, #tpu.memory_space<vmem>>, vector<1x32x256xf32>,
    return
  }
  func.func @transform_0(%arg0: i32, %arg1: i32) -> (i32, i32, i32) {
    %c0_i32 = arith.constant 0 : i32
    %c0_i32_0 = arith.constant 0 : i32
    return %arg0, %c0_i32, %arg1 : i32, i32, i32
  }
  func.func @transform_1(%arg0: i32, %arg1: i32) -> (i32, i32, i32) {
    %c0_i32 = arith.constant 0 : i32
    %c0_i32_0 = arith.constant 0 : i32
    return %arg0, %c0_i32, %arg1 : i32, i32, i32
  }
  func.func @transform_2(%arg0: i32, %arg1: i32) -> (i32, i32) {
    %c0_i32 = arith.constant 0 : i32
    %c0_i32_0 = arith.constant 0 : i32
    %c0_i32_1 = arith.constant 0 : i32
    return %c0_i32, %c0_i32_0 : i32, i32
  }
  func.func @transform_3(%arg0: i32, %arg1: i32) -> (i32, i32) {
    %c0_i32 = arith.constant 0 : i32
    %c0_i32_0 = arith.constant 0 : i32
    %c0_i32_1 = arith.constant 0 : i32
    return %c0_i32, %c0_i32_0 : i32, i32
  }
  func.func @transform_4(%arg0: i32, %arg1: i32) -> (i32, i32) {
    %c0_i32 = arith.constant 0 : i32
    %c0_i32_0 = arith.constant 0 : i32
    %c0_i32_1 = arith.constant 0 : i32
    return %c0_i32, %c0_i32_0 : i32, i32
  }
  func.func @transform_5(%arg0: i32, %arg1: i32) -> (i32, i32) {
    %c0_i32 = arith.constant 0 : i32
    %c0_i32_0 = arith.constant 0 : i32
    %c0_i32_1 = arith.constant 0 : i32
    return %c0_i32, %c0_i32_0 : i32, i32
  }
  func.func @transform_6(%arg0: i32, %arg1: i32) -> (i32, i32, i32) {
    %c0_i32 = arith.constant 0 : i32
    %c0_i32_0 = arith.constant 0 : i32
    return %arg0, %c0_i32, %arg1 : i32, i32, i32
  }
}

</mosaic_0001>

<llo_original>
// kernel: tpu_custom_call.1
$region0: #{tpu_custom_call.1}
  #allocation0 [shape = 'u32[]', space=smem, size = 0x4, offset = 0x4, fixed_abs, tag = 'smem constant byte address 0x4 - core index']
  #allocation1 [shape = 'u32[144,128]{1,0:T(1,128)}', space=vmem, size = 0x12000, scoped, tag = 'internal scratch']
  %s0 = inlined_call_operand.hbm [shape: f32[2,64,512], index: 0, kind: input, shape index: {}]
  %s1 = inlined_call_operand.hbm [shape: f32[2,64,512], index: 1, kind: input, shape index: {}]
  %s2 = inlined_call_operand.vmem [shape: f32[32,64], index: 2, kind: input, shape index: {}]
  %s3 = inlined_call_operand.vmem [shape: f32[32,1], index: 3, kind: input, shape index: {}]
  %s4 = inlined_call_operand.vmem [shape: f32[32,32], index: 4, kind: input, shape index: {}]
  %s5 = inlined_call_operand.vmem [shape: f32[32,1], index: 5, kind: input, shape index: {}]
  %s6 = inlined_call_operand.hbm [shape: f32[2,32,512], index: 6, kind: output, shape index: {}]
  %s7 = sld [smem:[#allocation0]]
  $region65: #{tpu_custom_call.1} parent=0
    _
  %s9 = ssub.s32 1, %s7
  %s10 = scalar_select 0, %s9, %s7
  $region1: #{tpu_custom_call.1} parent=0
    #allocation2 [shape = 'u8[131072]{0}', space=vmem, size = 0x20000, scoped, tag = 'input window, operand 0']
    #allocation3 [shape = 's32[2]{0}', space=sflag, size = 0x8, scoped, tag = 'scoped memory for tpu_custom_call.1']
    #allocation4 [shape = 's32[2]{0}', space=sflag, size = 0x8, scoped, tag = 'scoped memory for tpu_custom_call.1']
    #allocation5 [shape = 'u8[131072]{0}', space=vmem, size = 0x20000, scoped, tag = 'input window, operand 1']
    #allocation6 [shape = 's32[2]{0}', space=sflag, size = 0x8, scoped, tag = 'scoped memory for tpu_custom_call.1']
    #allocation7 [shape = 'u8[65536]{0}', space=vmem, size = 0x10000, scoped, tag = 'output window, operand 0']
    %11 = vsyncpa [#allocation3], 0
    %s12 = scalar_lea.sflag [#allocation3], 1
    %13 = vsyncpa %s12, 0
    %14 = vsyncpa [#allocation6], 0
    %s15 = scalar_lea.sflag [#allocation6], 1
    %16 = vsyncpa %s15, 0
    %17 = vsyncpa [#allocation4], 0
    %s18 = scalar_lea.sflag [#allocation4], 1
    %19 = vsyncpa %s18, 0
    loop: start=0, step=1, limit=6
    $region2: #{tpu_custom_call.1} parent=1 // loop_pre_header
      _
    $region3: #{tpu_custom_call.1} parent=1 // loop_header
      %s21 = sphi 0, %s25
      %p22 = scmp.ge.s32.totalorder %s21, 6
      %s28 = sphi 0, %s40
      %s29 = sphi 0, %s36
      %s30 = sphi 0, %s28
      %s31 = sphi 0, %s29
      %s32 = sphi 0, %s30
      %s33 = sphi 0, %s31
      %s45 = sphi 0, %s47
      %s48 = sphi 0, %s45
      %s49 = sphi 0, %s48
      %s65 = sphi 0, %s49
      %s73 = sphi 0, %s75
      %s76 = sphi 0, %s73
      %s77 = sphi 0, %s76
      %s93 = sphi 0, %s77
      %s97 = sphi 0, %s97
      %s99 = sphi 0, %s97
      %s100 = sphi 0, %s99
      %s114 = sphi 0, %s100
      %s118 = sphi 0, %s118
      %s120 = sphi 0, %s118
      %s121 = sphi 0, %s120
      %s135 = sphi 0, %s121
      %s139 = sphi 0, %s139
      %s141 = sphi 0, %s139
      %s142 = sphi 0, %s141
      %s156 = sphi 0, %s142
      %s160 = sphi 0, %s160
      %s162 = sphi 0, %s160
      %s163 = sphi 0, %s162
      %s177 = sphi 0, %s163
      %s185 = sphi 0, %s187
      %s188 = sphi 0, %s185
      %s189 = sphi 0, %s188
      %s205 = sphi 0, %s189
    $region4: #{tpu_custom_call.1} parent=1 // loop_header_branch
      %24 = sbr.rel (%p22) target = $region8
    $region5: #{tpu_custom_call.1} parent=1 // loop_body
      %s26 = ssub.s32 %s21, 1
      %s27 = ssub.s32 %s21, 2
      %s34 = sadd.s32 1, %s29
      %p35 = scmp.ge.s32.totalorder %s34, 2
      %s36 = scalar_select %p35, 0, %s34
      %s37 = sadd.s32 1, %s28
      %s38 = scalar_select %p35, %s37, %s28
      %p39 = scmp.ge.s32.totalorder %s38, 2
      %s40 = scalar_select %p39, 0, %s38
      %s41 = ssub.s32 %s28, %s40
      %s42 = ssub.s32 %s29, %s36
      %s43 = sor.u32 %s41, %s42
      %p44 = scmp.eq.s32.totalorder %s43, 0
      %s46 = sadd.s32 %s45, 1
      %s47 = scalar_select %p44, %s45, %s46
      %p50 = pneg %p44
      %p51 = scmp.eq.s32.totalorder %s21, 3
      %p52 = por %p50, %p51
      %p53 = scmp.ne.s32.totalorder %s45, %s48
      %p54 = scmp.eq.s32.totalorder %s21, 0
      %p55 = por %p53, %p54
      %p56 = scmp.ne.s32.totalorder %s45, %s48
      %p57 = scmp.eq.s32.totalorder %s26, 3
      %p58 = por %p56, %p57
      %p59 = scmp.ne.s32.totalorder %s48, %s49
      %p60 = scmp.eq.s32.totalorder %s26, 0
      %p61 = por %p59, %p60
      %p62 = scmp.ne.s32.totalorder %s48, %s49
      %p63 = scmp.eq.s32.totalorder %s27, 3
      %p64 = por %p62, %p63
      %p66 = scmp.ne.s32.totalorder %s49, %s65
      %p67 = scmp.eq.s32.totalorder %s27, 0
      %p68 = por %p66, %p67
      %s69 = ssub.s32 %s28, %s40
      %s70 = ssub.s32 %s29, %s36
      %s71 = sor.u32 %s69, %s70
      %p72 = scmp.eq.s32.totalorder %s71, 0
      %s74 = sadd.s32 %s73, 1
      %s75 = scalar_select %p72, %s73, %s74
      %p78 = pneg %p72
      %p79 = scmp.eq.s32.totalorder %s21, 3
      %p80 = por %p78, %p79
      %p81 = scmp.ne.s32.totalorder %s73, %s76
      %p82 = scmp.eq.s32.totalorder %s21, 0
      %p83 = por %p81, %p82
      %p84 = scmp.ne.s32.totalorder %s73, %s76
      %p85 = scmp.eq.s32.totalorder %s26, 3
      %p86 = por %p84, %p85
      %p87 = scmp.ne.s32.totalorder %s76, %s77
      %p88 = scmp.eq.s32.totalorder %s26, 0
      %p89 = por %p87, %p88
      %p90 = scmp.ne.s32.totalorder %s76, %s77
      %p91 = scmp.eq.s32.totalorder %s27, 3
      %p92 = por %p90, %p91
      %p94 = scmp.ne.s32.totalorder %s77, %s93
      %p95 = scmp.eq.s32.totalorder %s27, 0
      %p96 = por %p94, %p95
      %s98 = sadd.s32 %s97, 1
      %p101 = scmp.eq.s32.totalorder %s21, 3
      %p102 = scmp.ne.s32.totalorder %s97, %s99
      %p103 = scmp.eq.s32.totalorder %s21, 0
      %p104 = por %p102, %p103
      %p105 = scmp.ne.s32.totalorder %s97, %s99
      %p106 = scmp.eq.s32.totalorder %s26, 3
      %p107 = por %p105, %p106
      %p108 = scmp.ne.s32.totalorder %s99, %s100
      %p109 = scmp.eq.s32.totalorder %s26, 0
      %p110 = por %p108, %p109
      %p111 = scmp.ne.s32.totalorder %s99, %s100
      %p112 = scmp.eq.s32.totalorder %s27, 3
      %p113 = por %p111, %p112
      %p115 = scmp.ne.s32.totalorder %s100, %s114
      %p116 = scmp.eq.s32.totalorder %s27, 0
      %p117 = por %p115, %p116
      %s119 = sadd.s32 %s118, 1
      %p122 = scmp.eq.s32.totalorder %s21, 3
      %p123 = scmp.ne.s32.totalorder %s118, %s120
      %p124 = scmp.eq.s32.totalorder %s21, 0
      %p125 = por %p123, %p124
      %p126 = scmp.ne.s32.totalorder %s118, %s120
      %p127 = scmp.eq.s32.totalorder %s26, 3
      %p128 = por %p126, %p127
      %p129 = scmp.ne.s32.totalorder %s120, %s121
      %p130 = scmp.eq.s32.totalorder %s26, 0
      %p131 = por %p129, %p130
      %p132 = scmp.ne.s32.totalorder %s120, %s121
      %p133 = scmp.eq.s32.totalorder %s27, 3
      %p134 = por %p132, %p133
      %p136 = scmp.ne.s32.totalorder %s121, %s135
      %p137 = scmp.eq.s32.totalorder %s27, 0
      %p138 = por %p136, %p137
      %s140 = sadd.s32 %s139, 1
      %p143 = scmp.eq.s32.totalorder %s21, 3
      %p144 = scmp.ne.s32.totalorder %s139, %s141
      %p145 = scmp.eq.s32.totalorder %s21, 0
      %p146 = por %p144, %p145
      %p147 = scmp.ne.s32.totalorder %s139, %s141
      %p148 = scmp.eq.s32.totalorder %s26, 3
      %p149 = por %p147, %p148
      %p150 = scmp.ne.s32.totalorder %s141, %s142
      %p151 = scmp.eq.s32.totalorder %s26, 0
      %p152 = por %p150, %p151
      %p153 = scmp.ne.s32.totalorder %s141, %s142
      %p154 = scmp.eq.s32.totalorder %s27, 3
      %p155 = por %p153, %p154
      %p157 = scmp.ne.s32.totalorder %s142, %s156
      %p158 = scmp.eq.s32.totalorder %s27, 0
      %p159 = por %p157, %p158
      %s161 = sadd.s32 %s160, 1
      %p164 = scmp.eq.s32.totalorder %s21, 3
      %p165 = scmp.ne.s32.totalorder %s160, %s162
      %p166 = scmp.eq.s32.totalorder %s21, 0
      %p167 = por %p165, %p166
      %p168 = scmp.ne.s32.totalorder %s160, %s162
      %p169 = scmp.eq.s32.totalorder %s26, 3
      %p170 = por %p168, %p169
      %p171 = scmp.ne.s32.totalorder %s162, %s163
      %p172 = scmp.eq.s32.totalorder %s26, 0
      %p173 = por %p171, %p172
      %p174 = scmp.ne.s32.totalorder %s162, %s163
      %p175 = scmp.eq.s32.totalorder %s27, 3
      %p176 = por %p174, %p175
      %p178 = scmp.ne.s32.totalorder %s163, %s177
      %p179 = scmp.eq.s32.totalorder %s27, 0
      %p180 = por %p178, %p179
      %s181 = ssub.s32 %s28, %s40
      %s182 = ssub.s32 %s29, %s36
      %s183 = sor.u32 %s181, %s182
      %p184 = scmp.eq.s32.totalorder %s183, 0
      %s186 = sadd.s32 %s185, 1
      %s187 = scalar_select %p184, %s185, %s186
      %p190 = pneg %p184
      %p191 = scmp.eq.s32.totalorder %s21, 3
      %p192 = por %p190, %p191
      %p193 = scmp.ne.s32.totalorder %s185, %s188
      %p194 = scmp.eq.s32.totalorder %s21, 0
      %p195 = por %p193, %p194
      %p196 = scmp.ne.s32.totalorder %s185, %s188
      %p197 = scmp.eq.s32.totalorder %s26, 3
      %p198 = por %p196, %p197
      %p199 = scmp.ne.s32.totalorder %s188, %s189
      %p200 = scmp.eq.s32.totalorder %s26, 0
      %p201 = por %p199, %p200
      %p202 = scmp.ne.s32.totalorder %s188, %s189
      %p203 = scmp.eq.s32.totalorder %s27, 3
      %p204 = por %p202, %p203
      %p206 = scmp.ne.s32.totalorder %s189, %s205
      %p207 = scmp.eq.s32.totalorder %s27, 0
      %p208 = por %p206, %p207
      %p209 = scmp.le.s32.totalorder 1, %s21
      %p210 = scmp.lt.s32.totalorder %s21, 5
      %p211 = pnand %p209, %p210
      %p212 = pneg %p211
      // Predicated region
      $region9: #{tpu_custom_call.1} parent=5 // pred_check
        _
      $region10: #{tpu_custom_call.1} parent=5 // pred_check_branch
        %214 = sbr.rel (%p211) target = $region12
      $region11: #{tpu_custom_call.1} parent=5 // pred_region
        %s215 = ssub.s32 %s21, 1
        // Predicated region
        $region13: #{tpu_custom_call.1} parent=11 // pred_check
          %p216 = pneg %p110
        $region14: #{tpu_custom_call.1} parent=11 // pred_check_branch
          %218 = sbr.rel (%p216) target = $region16
        $region15: #{tpu_custom_call.1} parent=11 // pred_region
          _
        $region16: #{tpu_custom_call.1} parent=11 // pred_fallthru
          _
        // Predicated region
        $region17: #{tpu_custom_call.1} parent=11 // pred_check
          %p219 = pneg %p131
        $region18: #{tpu_custom_call.1} parent=11 // pred_check_branch
          %221 = sbr.rel (%p219) target = $region20
        $region19: #{tpu_custom_call.1} parent=11 // pred_region
          _
        $region20: #{tpu_custom_call.1} parent=11 // pred_fallthru
          _
        // Predicated region
        $region21: #{tpu_custom_call.1} parent=11 // pred_check
          %p222 = pneg %p152
        $region22: #{tpu_custom_call.1} parent=11 // pred_check_branch
          %224 = sbr.rel (%p222) target = $region24
        $region23: #{tpu_custom_call.1} parent=11 // pred_region
          _
        $region24: #{tpu_custom_call.1} parent=11 // pred_fallthru
          _
        // Predicated region
        $region25: #{tpu_custom_call.1} parent=11 // pred_check
          %p225 = pneg %p173
        $region26: #{tpu_custom_call.1} parent=11 // pred_check_branch
          %227 = sbr.rel (%p225) target = $region28
        $region27: #{tpu_custom_call.1} parent=11 // pred_region
          _
        $region28: #{tpu_custom_call.1} parent=11 // pred_fallthru
          _
      $region12: #{tpu_custom_call.1} parent=5 // pred_fallthru
        _
      %p228 = scmp.lt.s32.totalorder %s21, 4
      // Predicated region
      $region29: #{tpu_custom_call.1} parent=5 // pred_check
        %p229 = pneg %p228
      $region30: #{tpu_custom_call.1} parent=5 // pred_check_branch
        %231 = sbr.rel (%p229) target = $region32
      $region31: #{tpu_custom_call.1} parent=5 // pred_region
        // Predicated region
        $region33: #{tpu_custom_call.1} parent=31 // pred_check
          %p232 = pneg %p55
        $region34: #{tpu_custom_call.1} parent=31 // pred_check_branch
          %234 = sbr.rel (%p232) target = $region36
        $region35: #{tpu_custom_call.1} parent=31 // pred_region
          %s235 = sand.u32 %s45, 1
          %s236 = scalar_lea.sflag [#allocation3], %s235
          %s237 = sand.u32 %s45, 1
          %s238 = smul.addr %s237, 128
          %s239 = scalar_lea.vmem [#allocation2], %s238
          %s240 = smul.u32 2, %s29
          %s242 = ssub.s32 2048, 2048
          %243 = vsyncadd %s236, %s242
          %s244 = smul.addr %s28, 32
          %s245 = sadd.s32 %s240, %s244
          %s246 = smul.addr %s245, 128
          %s247 = scalar_lea.hbm %s0, %s246
          %s248 = sshll.u32 %s239, 4
          %s249 = int_to_ptr.vmem [resolvable:$true] %s248
          %254 = dma.hbm_to_vmem [thread:$0]  %s247, 2048, %s249, %s236, 512, 256, 16
        $region36: #{tpu_custom_call.1} parent=31 // pred_fallthru
          _
        // Predicated region
        $region37: #{tpu_custom_call.1} parent=31 // pred_check
          %p255 = pneg %p83
        $region38: #{tpu_custom_call.1} parent=31 // pred_check_branch
          %257 = sbr.rel (%p255) target = $region40
        $region39: #{tpu_custom_call.1} parent=31 // pred_region
          %s258 = sand.u32 %s73, 1
          %s259 = scalar_lea.sflag [#allocation6], %s258
          %s260 = sand.u32 %s73, 1
          %s261 = smul.addr %s260, 128
          %s262 = scalar_lea.vmem [#allocation5], %s261
          %s263 = smul.u32 2, %s29
          %s265 = ssub.s32 2048, 2048
          %266 = vsyncadd %s259, %s265
          %s267 = smul.addr %s28, 32
          %s268 = sadd.s32 %s263, %s267
          %s269 = smul.addr %s268, 128
          %s270 = scalar_lea.hbm %s1, %s269
          %s271 = sshll.u32 %s262, 4
          %s272 = int_to_ptr.vmem [resolvable:$true] %s271
          %277 = dma.hbm_to_vmem [thread:$0]  %s270, 2048, %s272, %s259, 512, 256, 16
        $region40: #{tpu_custom_call.1} parent=31 // pred_fallthru
          _
      $region32: #{tpu_custom_call.1} parent=5 // pred_fallthru
        _
      %p278 = scmp.le.s32.totalorder 1, %s21
      %p279 = scmp.lt.s32.totalorder %s21, 5
      %p280 = pnand %p278, %p279
      %p281 = pneg %p280
      // Predicated region
      $region41: #{tpu_custom_call.1} parent=5 // pred_check
        _
      $region42: #{tpu_custom_call.1} parent=5 // pred_check_branch
        %283 = sbr.rel (%p280) target = $region44
      $region43: #{tpu_custom_call.1} parent=5 // pred_region
        %s284 = ssub.s32 %s21, 1
        %s285 = sand.u32 %s48, 1
        %s286 = scalar_lea.sflag [#allocation3], %s285
        %s287 = sand.u32 %s48, 1
        %s288 = smul.addr %s287, 128
        %s289 = scalar_lea.vmem [#allocation2], %s288
        // Predicated region
        $region45: #{tpu_custom_call.1} parent=43 // pred_check
          %p290 = pneg %p61
        $region46: #{tpu_custom_call.1} parent=43 // pred_check_branch
          %292 = sbr.rel (%p290) target = $region48
        $region47: #{tpu_custom_call.1} parent=43 // pred_region
          %293 = dma.done %s286, 2048
        $region48: #{tpu_custom_call.1} parent=43 // pred_fallthru
          _
        %s294 = sand.u32 %s76, 1
        %s295 = scalar_lea.sflag [#allocation6], %s294
        %s296 = sand.u32 %s76, 1
        %s297 = smul.addr %s296, 128
        %s298 = scalar_lea.vmem [#allocation5], %s297
        // Predicated region
        $region49: #{tpu_custom_call.1} parent=43 // pred_check
          %p299 = pneg %p89
        $region50: #{tpu_custom_call.1} parent=43 // pred_check_branch
          %301 = sbr.rel (%p299) target = $region52
        $region51: #{tpu_custom_call.1} parent=43 // pred_region
          %302 = dma.done %s295, 2048
        $region52: #{tpu_custom_call.1} parent=43 // pred_fallthru
          _
        %s303 = sand.u32 %s48, 1
        %s304 = scalar_lea.sflag [#allocation3], %s303
        %s305 = sand.u32 %s48, 1
        %s306 = smul.addr %s305, 128
        %s307 = scalar_lea.vmem [#allocation2], %s306
        %p308 = pneg %p61
        %p309 = pneg %p58
        %s310 = sand.u32 %s76, 1
        %s311 = scalar_lea.sflag [#allocation6], %s310
        %s312 = sand.u32 %s76, 1
        %s313 = smul.addr %s312, 128
        %s314 = scalar_lea.vmem [#allocation5], %s313
        %p315 = pneg %p89
        %p316 = pneg %p86
        %p317 = pneg %p110
        %p318 = pneg %p107
        %p319 = pneg %p131
        %p320 = pneg %p128
        %p321 = pneg %p152
        %p322 = pneg %p149
        %p323 = pneg %p173
        %p324 = pneg %p170
        %p325 = pneg %p201
        %p326 = pneg %p198
        %s327 = sand.u32 %s188, 1
        %s328 = scalar_lea.sflag [#allocation4], %s327
        %s329 = sand.u32 %s188, 1
        %s330 = smul.addr %s329, 64
        %s331 = scalar_lea.vmem [#allocation7], %s330
        %s332 = smul.u32 2, %s31
        %s333 = smul.u32 2, %s31
        %s334 = smul.u32 2, %s31
        %v335 = vld [vmem:[%s289] sm:$0xff]
        %v336 = vld [vmem:[%s289 + $0x8] sm:$0xff]
        %v337 = vld [vmem:[%s289 + $0x10] sm:$0xff]
        %v338 = vld [vmem:[%s289 + $0x18] sm:$0xff]
        %v339 = vld [vmem:[%s289 + $0x20] sm:$0xff]
        %v340 = vld [vmem:[%s289 + $0x28] sm:$0xff]
        %v341 = vld [vmem:[%s289 + $0x30] sm:$0xff]
        %v342 = vld [vmem:[%s289 + $0x38] sm:$0xff]
        %v343 = vld [vmem:[%s289 + $0x40] sm:$0xff]
        %v344 = vld [vmem:[%s289 + $0x48] sm:$0xff]
        %v345 = vld [vmem:[%s289 + $0x50] sm:$0xff]
        %v346 = vld [vmem:[%s289 + $0x58] sm:$0xff]
        %v347 = vld [vmem:[%s289 + $0x60] sm:$0xff]
        %v348 = vld [vmem:[%s289 + $0x68] sm:$0xff]
        %v349 = vld [vmem:[%s289 + $0x70] sm:$0xff]
        %v350 = vld [vmem:[%s289 + $0x78] sm:$0xff]
        %v351 = vld [vmem:[%s298] sm:$0xff]
        %v352 = vld [vmem:[%s298 + $0x8] sm:$0xff]
        %v353 = vld [vmem:[%s298 + $0x10] sm:$0xff]
        %v354 = vld [vmem:[%s298 + $0x18] sm:$0xff]
        %v355 = vld [vmem:[%s298 + $0x20] sm:$0xff]
        %v356 = vld [vmem:[%s298 + $0x28] sm:$0xff]
        %v357 = vld [vmem:[%s298 + $0x30] sm:$0xff]
        %v358 = vld [vmem:[%s298 + $0x38] sm:$0xff]
        %v359 = vld [vmem:[%s298 + $0x40] sm:$0xff]
        %v360 = vld [vmem:[%s298 + $0x48] sm:$0xff]
        %v361 = vld [vmem:[%s298 + $0x50] sm:$0xff]
        %v362 = vld [vmem:[%s298 + $0x58] sm:$0xff]
        %v363 = vld [vmem:[%s298 + $0x60] sm:$0xff]
        %v364 = vld [vmem:[%s298 + $0x68] sm:$0xff]
        %v365 = vld [vmem:[%s298 + $0x70] sm:$0xff]
        %v366 = vld [vmem:[%s298 + $0x78] sm:$0xff]
        %v367 = vadd.f32 %v335, %v351
        %v368 = vadd.f32 %v336, %v352
        %v369 = vadd.f32 %v337, %v353
        %v370 = vadd.f32 %v338, %v354
        %v371 = vadd.f32 %v339, %v355
        %v372 = vadd.f32 %v340, %v356
        %v373 = vadd.f32 %v341, %v357
        %v374 = vadd.f32 %v342, %v358
        %v375 = vadd.f32 %v343, %v359
        %v376 = vadd.f32 %v344, %v360
        %v377 = vadd.f32 %v345, %v361
        %v378 = vadd.f32 %v346, %v362
        %v379 = vadd.f32 %v347, %v363
        %v380 = vadd.f32 %v348, %v364
        %v381 = vadd.f32 %v349, %v365
        %v382 = vadd.f32 %v350, %v366
        %v383 = vld [vmem:[%s2] sm:$0xff]
        %v384 = vld [vmem:[%s2 + $0x8] sm:$0xff]
        %v385 = vld [vmem:[%s2 + $0x10] sm:$0xff]
        %v386 = vld [vmem:[%s2 + $0x18] sm:$0xff]
        %v387 = vld [vmem:[%s3] sm:$0xff]
        %v388 = vld [vmem:[%s3 + $0x8] sm:$0xff]
        %v389 = vld [vmem:[%s3 + $0x10] sm:$0xff]
        %v390 = vld [vmem:[%s3 + $0x18] sm:$0xff]
        %392 = vset.pattern.permute.xlu0 0
        %393 = vperm.xlu0 %392, %v387
        %v394 = vpop.permute.xlu0 %393
        %397 = vset.pattern.permute.xlu0 0
        %398 = vperm.xlu0 %397, %v388
        %v399 = vpop.permute.xlu0 %398
        %402 = vset.pattern.permute.xlu0 0
        %403 = vperm.xlu0 %402, %v389
        %v404 = vpop.permute.xlu0 %403
        %407 = vset.pattern.permute.xlu0 0
        %408 = vperm.xlu0 %407, %v390
        %v409 = vpop.permute.xlu0 %408
        %vm411 = vcmask 523264
        %v413 = vsel %vm411, %v383, 0
        %v416 = vsel %vm411, %v384, 0
        %v419 = vsel %vm411, %v385, 0
        %v422 = vsel %vm411, %v386, 0
        %424 = vmatprep.subr.mxu0 %v368
        %425 = vmatpush1.msra.mxu0 %v367
        %426 = vmatprep.subr.mxu0 %v370
        %427 = vmatpush1.msra.mxu0 %v369
        %428 = vmatprep.subr.mxu0 %v372
        %429 = vmatpush1.msra.mxu0 %v371
        %430 = vmatprep.subr.mxu0 %v374
        %431 = vmatpush1.msra.mxu0 %v373
        %432 = vmatprep.subr.mxu0 %v376
        %433 = vmatpush1.msra.mxu0 %v375
        %434 = vmatprep.subr.mxu0 %v378
        %435 = vmatpush1.msra.mxu0 %v377
        %436 = vmatprep.subr.mxu0 %v380
        %437 = vmatpush1.msra.mxu0 %v379
        %438 = vmatprep.subr.mxu0 %v382
        %439 = vmatpush1.msra.mxu0 %v381
        %440 = vmatprep.subr.mxu0 0.0
        %441 = vmatpush1.msra.mxu0 0.0
        %442 = vmatprep.subr.mxu0 0.0
        %443 = vmatpush1.msra.mxu0 0.0
        %444 = vmatprep.subr.mxu0 0.0
        %445 = vmatpush1.msra.mxu0 0.0
        %446 = vmatprep.subr.mxu0 0.0
        %447 = vmatpush1.msra.mxu0 0.0
        %448 = vmatprep.subr.mxu0 0.0
        %449 = vmatpush1.msra.mxu0 0.0
        %450 = vmatprep.subr.mxu0 0.0
        %451 = vmatpush1.msra.mxu0 0.0
        %452 = vmatprep.subr.mxu0 0.0
        %453 = vmatpush1.msra.mxu0 0.0
        %454 = vmatprep.subr.mxu0 0.0
        %455 = vmatpush1.msra.mxu0 0.0
        %456 = vmatprep.subr.mxu0 0.0
        %457 = vmatpush1.msra.mxu0 0.0
        %458 = vmatprep.subr.mxu0 0.0
        %459 = vmatpush1.msra.mxu0 0.0
        %460 = vmatprep.subr.mxu0 0.0
        %461 = vmatpush1.msra.mxu0 0.0
        %462 = vmatprep.subr.mxu0 0.0
        %463 = vmatpush1.msra.mxu0 0.0
        %464 = vmatprep.subr.mxu0 0.0
        %465 = vmatpush1.msra.mxu0 0.0
        %466 = vmatprep.subr.mxu0 0.0
        %467 = vmatpush1.msra.mxu0 0.0
        %468 = vmatprep.subr.mxu0 0.0
        %469 = vmatpush1.msra.mxu0 0.0
        %470 = vmatprep.subr.mxu0 0.0
        %471 = vmatpush1.msra.mxu0 0.0
        %472 = vmatprep.subr.mxu0 0.0
        %473 = vmatpush1.msra.mxu0 0.0
        %474 = vmatprep.subr.mxu0 0.0
        %475 = vmatpush1.msra.mxu0 0.0
        %476 = vmatprep.subr.mxu0 0.0
        %477 = vmatpush1.msra.mxu0 0.0
        %478 = vmatprep.subr.mxu0 0.0
        %479 = vmatpush1.msra.mxu0 0.0
        %480 = vmatprep.subr.mxu0 0.0
        %481 = vmatpush1.msra.mxu0 0.0
        %482 = vmatprep.subr.mxu0 0.0
        %483 = vmatpush1.msra.mxu0 0.0
        %484 = vmatprep.subr.mxu0 0.0
        %485 = vmatpush1.msra.mxu0 0.0
        %486 = vmatprep.subr.mxu0 0.0
        %487 = vmatpush1.msra.mxu0 0.0
        %488 = vmatprep.mubr.f32.mxu0 0.0
        %489 = vmatmul.mubr.f32.gmra.mrb[0].mxu0 %v413
        %v490 = vpop.f32.mrb[0].mxu0
        %v491 = vadd.f32 %v394, %v490
        %v492 = vpop.f32.mrb[0].mxu0
        %v493 = vadd.f32 %v394, %v492
        %494 = vmatprep.mubr.f32.mxu0 0.0
        %495 = vmatmul.mubr.f32.gmra.mrb[0].mxu0 %v416
        %v496 = vpop.f32.mrb[0].mxu0
        %v497 = vadd.f32 %v399, %v496
        %v498 = vpop.f32.mrb[0].mxu0
        %v499 = vadd.f32 %v399, %v498
        %500 = vmatprep.mubr.f32.mxu0 0.0
        %501 = vmatmul.mubr.f32.gmra.mrb[0].mxu0 %v419
        %v502 = vpop.f32.mrb[0].mxu0
        %v503 = vadd.f32 %v404, %v502
        %v504 = vpop.f32.mrb[0].mxu0
        %v505 = vadd.f32 %v404, %v504
        %506 = vmatprep.mubr.f32.mxu0 0.0
        %507 = vmatmul.mubr.f32.gmra.mrb[0].mxu0 %v422
        %v508 = vpop.f32.mrb[0].mxu0
        %v509 = vadd.f32 %v409, %v508
        %v510 = vpop.f32.mrb[0].mxu0
        %v511 = vadd.f32 %v409, %v510
        %512 = vdwg.mxu0
        %v513 = vmax.f32 %v491, 0.0
        %v514 = vmax.f32 %v493, 0.0
        %v515 = vmax.f32 %v497, 0.0
        %v516 = vmax.f32 %v499, 0.0
        %v517 = vmax.f32 %v503, 0.0
        %v518 = vmax.f32 %v505, 0.0
        %v519 = vmax.f32 %v509, 0.0
        %v520 = vmax.f32 %v511, 0.0
        %v521 = vld [vmem:[%s4] sm:$0xff]
        %v522 = vld [vmem:[%s4 + $0x8] sm:$0xff]
        %v523 = vld [vmem:[%s4 + $0x10] sm:$0xff]
        %v524 = vld [vmem:[%s4 + $0x18] sm:$0xff]
        %v525 = vld [vmem:[%s5] sm:$0xff]
        %v526 = vld [vmem:[%s5 + $0x8] sm:$0xff]
        %v527 = vld [vmem:[%s5 + $0x10] sm:$0xff]
        %v528 = vld [vmem:[%s5 + $0x18] sm:$0xff]
        %530 = vset.pattern.permute.xlu0 0
        %531 = vperm.xlu0 %530, %v525
        %v532 = vpop.permute.xlu0 %531
        %535 = vset.pattern.permute.xlu0 0
        %536 = vperm.xlu0 %535, %v526
        %v537 = vpop.permute.xlu0 %536
        %540 = vset.pattern.permute.xlu0 0
        %541 = vperm.xlu0 %540, %v527
        %v542 = vpop.permute.xlu0 %541
        %545 = vset.pattern.permute.xlu0 0
        %546 = vperm.xlu0 %545, %v528
        %v547 = vpop.permute.xlu0 %546
        %vm549 = vcmask 261120
        %v551 = vsel %vm549, %v521, 0
        %v554 = vsel %vm549, %v522, 0
        %v557 = vsel %vm549, %v523, 0
        %v560 = vsel %vm549, %v524, 0
        %562 = vmatprep.subr.mxu0 %v514
        %563 = vmatpush1.msra.mxu0 %v513
        %564 = vmatprep.subr.mxu0 %v516
        %565 = vmatpush1.msra.mxu0 %v515
        %566 = vmatprep.subr.mxu0 %v518
        %567 = vmatpush1.msra.mxu0 %v517
        %568 = vmatprep.subr.mxu0 %v520
        %569 = vmatpush1.msra.mxu0 %v519
        %570 = vmatprep.subr.mxu0 0.0
        %571 = vmatpush1.msra.mxu0 0.0
        %572 = vmatprep.subr.mxu0 0.0
        %573 = vmatpush1.msra.mxu0 0.0
        %574 = vmatprep.subr.mxu0 0.0
        %575 = vmatpush1.msra.mxu0 0.0
        %576 = vmatprep.subr.mxu0 0.0
        %577 = vmatpush1.msra.mxu0 0.0
        %578 = vmatprep.subr.mxu0 0.0
        %579 = vmatpush1.msra.mxu0 0.0
        %580 = vmatprep.subr.mxu0 0.0
        %581 = vmatpush1.msra.mxu0 0.0
        %582 = vmatprep.subr.mxu0 0.0
        %583 = vmatpush1.msra.mxu0 0.0
        %584 = vmatprep.subr.mxu0 0.0
        %585 = vmatpush1.msra.mxu0 0.0
        %586 = vmatprep.subr.mxu0 0.0
        %587 = vmatpush1.msra.mxu0 0.0
        %588 = vmatprep.subr.mxu0 0.0
        %589 = vmatpush1.msra.mxu0 0.0
        %590 = vmatprep.subr.mxu0 0.0
        %591 = vmatpush1.msra.mxu0 0.0
        %592 = vmatprep.subr.mxu0 0.0
        %593 = vmatpush1.msra.mxu0 0.0
        %594 = vmatprep.subr.mxu0 0.0
        %595 = vmatpush1.msra.mxu0 0.0
        %596 = vmatprep.subr.mxu0 0.0
        %597 = vmatpush1.msra.mxu0 0.0
        %598 = vmatprep.subr.mxu0 0.0
        %599 = vmatpush1.msra.mxu0 0.0
        %600 = vmatprep.subr.mxu0 0.0
        %601 = vmatpush1.msra.mxu0 0.0
        %602 = vmatprep.subr.mxu0 0.0
        %603 = vmatpush1.msra.mxu0 0.0
        %604 = vmatprep.subr.mxu0 0.0
        %605 = vmatpush1.msra.mxu0 0.0
        %606 = vmatprep.subr.mxu0 0.0
        %607 = vmatpush1.msra.mxu0 0.0
        %608 = vmatprep.subr.mxu0 0.0
        %609 = vmatpush1.msra.mxu0 0.0
        %610 = vmatprep.subr.mxu0 0.0
        %611 = vmatpush1.msra.mxu0 0.0
        %612 = vmatprep.subr.mxu0 0.0
        %613 = vmatpush1.msra.mxu0 0.0
        %614 = vmatprep.subr.mxu0 0.0
        %615 = vmatpush1.msra.mxu0 0.0
        %616 = vmatprep.subr.mxu0 0.0
        %617 = vmatpush1.msra.mxu0 0.0
        %618 = vmatprep.subr.mxu0 0.0
        %619 = vmatpush1.msra.mxu0 0.0
        %620 = vmatprep.subr.mxu0 0.0
        %621 = vmatpush1.msra.mxu0 0.0
        %622 = vmatprep.subr.mxu0 0.0
        %623 = vmatpush1.msra.mxu0 0.0
        %624 = vmatprep.subr.mxu0 0.0
        %625 = vmatpush1.msra.mxu0 0.0
        %626 = vmatprep.mubr.f32.mxu0 0.0
        %627 = vmatmul.mubr.f32.gmra.mrb[0].mxu0 %v551
        %v628 = vpop.f32.mrb[0].mxu0
        %v629 = vadd.f32 %v532, %v628
        %v630 = vpop.f32.mrb[0].mxu0
        %v631 = vadd.f32 %v532, %v630
        %632 = vmatprep.mubr.f32.mxu0 0.0
        %633 = vmatmul.mubr.f32.gmra.mrb[0].mxu0 %v554
        %v634 = vpop.f32.mrb[0].mxu0
        %v635 = vadd.f32 %v537, %v634
        %v636 = vpop.f32.mrb[0].mxu0
        %v637 = vadd.f32 %v537, %v636
        %638 = vmatprep.mubr.f32.mxu0 0.0
        %639 = vmatmul.mubr.f32.gmra.mrb[0].mxu0 %v557
        %v640 = vpop.f32.mrb[0].mxu0
        %v641 = vadd.f32 %v542, %v640
        %v642 = vpop.f32.mrb[0].mxu0
        %v643 = vadd.f32 %v542, %v642
        %644 = vmatprep.mubr.f32.mxu0 0.0
        %645 = vmatmul.mubr.f32.gmra.mrb[0].mxu0 %v560
        %v646 = vpop.f32.mrb[0].mxu0
        %v647 = vadd.f32 %v547, %v646
        %v648 = vpop.f32.mrb[0].mxu0
        %v649 = vadd.f32 %v547, %v648
        %650 = vdwg.mxu0
        %v651 = vmax.f32 %v629, 0.0
        %v652 = vmax.f32 %v631, 0.0
        %v653 = vmax.f32 %v635, 0.0
        %v654 = vmax.f32 %v637, 0.0
        %v655 = vmax.f32 %v641, 0.0
        %v656 = vmax.f32 %v643, 0.0
        %v657 = vmax.f32 %v647, 0.0
        %v658 = vmax.f32 %v649, 0.0
        %659 = vst [vmem:[%s331] sm:$0xff] %v651
        %660 = vst [vmem:[%s331 + $0x8] sm:$0xff] %v652
        %661 = vst [vmem:[%s331 + $0x10] sm:$0xff] %v653
        %662 = vst [vmem:[%s331 + $0x18] sm:$0xff] %v654
        %663 = vst [vmem:[%s331 + $0x20] sm:$0xff] %v655
        %664 = vst [vmem:[%s331 + $0x28] sm:$0xff] %v656
        %665 = vst [vmem:[%s331 + $0x30] sm:$0xff] %v657
        %666 = vst [vmem:[%s331 + $0x38] sm:$0xff] %v658
        %s667 = sand.u32 %s188, 1
        %s668 = scalar_lea.sflag [#allocation4], %s667
        %s669 = sand.u32 %s188, 1
        %s670 = smul.addr %s669, 64
        %s671 = scalar_lea.vmem [#allocation7], %s670
        // Predicated region
        $region53: #{tpu_custom_call.1} parent=43 // pred_check
          %p672 = pneg %p198
        $region54: #{tpu_custom_call.1} parent=43 // pred_check_branch
          %674 = sbr.rel (%p672) target = $region56
        $region55: #{tpu_custom_call.1} parent=43 // pred_region
          %s675 = smul.u32 2, %s31
          %s677 = ssub.s32 1024, 1024
          %678 = vsyncadd %s668, %s677
          %s679 = smul.addr %s30, 16
          %s680 = sadd.s32 %s675, %s679
          %s681 = smul.addr %s680, 128
          %s682 = scalar_lea.hbm %s6, %s681
          %s683 = sshll.u32 %s671, 4
          %s684 = int_to_ptr.vmem [resolvable:$true] %s683
          %689 = dma.vmem_to_hbm [thread:$0]  %s684, 1024, %s682, %s668, 256, 512, 16
        $region56: #{tpu_custom_call.1} parent=43 // pred_fallthru
          _
      $region44: #{tpu_custom_call.1} parent=5 // pred_fallthru
        _
      %p690 = scmp.le.s32.totalorder 2, %s21
      // Predicated region
      $region57: #{tpu_custom_call.1} parent=5 // pred_check
        %p691 = pneg %p690
      $region58: #{tpu_custom_call.1} parent=5 // pred_check_branch
        %693 = sbr.rel (%p691) target = $region60
      $region59: #{tpu_custom_call.1} parent=5 // pred_region
        %s694 = ssub.s32 %s21, 2
        // Predicated region
        $region61: #{tpu_custom_call.1} parent=59 // pred_check
          %p695 = pneg %p204
        $region62: #{tpu_custom_call.1} parent=59 // pred_check_branch
          %697 = sbr.rel (%p695) target = $region64
        $region63: #{tpu_custom_call.1} parent=59 // pred_region
          %s698 = sand.u32 %s189, 1
          %s699 = scalar_lea.sflag [#allocation4], %s698
          %s700 = sand.u32 %s189, 1
          %s701 = smul.addr %s700, 64
          %s702 = scalar_lea.vmem [#allocation7], %s701
          %703 = dma.done %s699, 1024
        $region64: #{tpu_custom_call.1} parent=59 // pred_fallthru
          _
      $region60: #{tpu_custom_call.1} parent=5 // pred_fallthru
        _
    $region6: #{tpu_custom_call.1} parent=1 // loop_footer
      %s25 = sadd.s32 1, %s21
    $region7: #{tpu_custom_call.1} parent=1 // loop_footer_branch
      %20 = sbr.rel target = $region3
    $region8: #{tpu_custom_call.1} parent=1 // loop_exit
      _
    %704 = vsyncpa [#allocation3], 1
    %s705 = scalar_lea.sflag [#allocation3], 1
    %706 = vsyncpa %s705, 1
    %707 = vsyncpa [#allocation6], 1
    %s708 = scalar_lea.sflag [#allocation6], 1
    %709 = vsyncpa %s708, 1
    %710 = vsyncpa [#allocation4], 1
    %s711 = scalar_lea.sflag [#allocation4], 1
    %712 = vsyncpa %s711, 1

</llo_original>
